<compile_context>
chip_gen: v6e
topology: v6e:2x2x1
jax: 0.10.0
libtpu: 0.0.40
codegen_flags: <defaults>
</compile_context>

<pallas_src>
from functools import partial

import jax
import jax.numpy as jnp
from jax.experimental import pallas as pl
from jax.experimental.pallas import tpu as pltpu


def deeponet_kernel(b_ref,            # SMEM scalar bias b, shape (1,)
                    x_ref,            # (TILE_B, K1)  concat[x_func | x_loc]
                    w1_ref, b1_ref,   # (K1, 2H), (1, 2H)  block-diag layer 1
                    w2_ref, b2_ref,   # (2H, 2H), (1, 2H)  block-diag layer 2
                    out_ref,          # (1, 1, TILE_B)
                    *, hidden):
    x = x_ref[...]

    # ---- fused layer 1: [branch_hidden | trunk_hidden], tanh on both halves ----
    h = jnp.tanh(
        jnp.dot(x, w1_ref[...], preferred_element_type=jnp.float32) + b1_ref[...]
    )

    # ---- fused layer 2: z = [branch_out | trunk_preact] ----
    z = jnp.dot(h, w2_ref[...], preferred_element_type=jnp.float32) + b2_ref[...]

    branch = z[:, :hidden]                # linear output of branch net
    trunk = jnp.tanh(z[:, hidden:])       # activation_trunk applied to trunk output

    # ---- einsum 'bi,bi->b' + scalar bias, stored lane-dense as a row ----
    dot = jnp.sum(branch * trunk, axis=-1)          # (TILE_B,)
    out_ref[...] = (dot + b_ref[0]).reshape(1, 1, -1)


def deeponet_forward(x_func, x_loc, params, tile_b=512):
    """params: dict with wb1, bb1, wb2, bb2, wt1, bt1, wt2, bt2, b (weights as (in, out))."""
    B, in_b = x_func.shape
    in_t = x_loc.shape[1]
    H = params["wb2"].shape[1]
    assert params["wt2"].shape[1] == H, "branch/trunk output widths must match"

    # ---- build fused block-diagonal parameters (tiny, ~16 KiB; resident in VMEM) ----
    K1 = in_b + in_t
    w1 = jnp.zeros((K1, 2 * H), jnp.float32)
    w1 = w1.at[:in_b, :H].set(params["wb1"]).at[in_b:, H:].set(params["wt1"])
    b1 = jnp.concatenate([params["bb1"], params["bt1"]], axis=-1)        # (1, 2H)
    w2 = jnp.zeros((2 * H, 2 * H), jnp.float32)
    w2 = w2.at[:H, :H].set(params["wb2"]).at[H:, H:].set(params["wt2"])
    b2 = jnp.concatenate([params["bb2"], params["bt2"]], axis=-1)        # (1, 2H)

    # ---- batch tiling (TILE_B multiple of 128 -> lane-dense output stores) ----
    tile_b = min(tile_b, -(-B // 128) * 128)
    b_pad = -(-B // tile_b) * tile_b
    grid_b = b_pad // tile_b

    x_in = jnp.concatenate([x_func, x_loc], axis=-1)                     # (B, K1)
    if b_pad != B:
        x_in = jnp.pad(x_in, ((0, b_pad - B), (0, 0)))

    out3 = pl.pallas_call(
        partial(deeponet_kernel, hidden=H),
        out_shape=jax.ShapeDtypeStruct((grid_b, 1, tile_b), jnp.float32),
        grid=(grid_b,),
        in_specs=[
            pl.BlockSpec(memory_space=pltpu.SMEM),                 # scalar bias b
            pl.BlockSpec((tile_b, K1), lambda i: (i, 0)),          # activations: tiled
            pl.BlockSpec((K1, 2 * H), lambda i: (0, 0)),           # weights: resident
            pl.BlockSpec((1, 2 * H), lambda i: (0, 0)),
            pl.BlockSpec((2 * H, 2 * H), lambda i: (0, 0)),
            pl.BlockSpec((1, 2 * H), lambda i: (0, 0)),
        ],
        out_specs=pl.BlockSpec((1, 1, tile_b), lambda i: (i, 0, 0)),
        compiler_params=pltpu.CompilerParams(
            dimension_semantics=("parallel",),                     # v7x: shard batch over 2 TCs
        ),
    )(params["b"], x_in, w1, b1, w2, b2)

    return out3.reshape(b_pad, 1)[:B]


deeponet_forward_jit = jax.jit(deeponet_forward, static_argnames=("tile_b",))


def _glorot(key, fan_in, fan_out):
    std = (2.0 / (fan_in + fan_out)) ** 0.5
    return jax.random.normal(key, (fan_in, fan_out), dtype=jnp.float32) * std


def make_params(key, layer_sizes_branch, layer_sizes_trunk):
    kb1, kb2, kt1, kt2 = jax.random.split(key, 4)
    ib0, ib1, ib2 = layer_sizes_branch
    it0, it1, it2 = layer_sizes_trunk
    return {
        "wb1": _glorot(kb1, ib0, ib1), "bb1": jnp.zeros((1, ib1), jnp.float32),
        "wb2": _glorot(kb2, ib1, ib2), "bb2": jnp.zeros((1, ib2), jnp.float32),
        "wt1": _glorot(kt1, it0, it1), "bt1": jnp.zeros((1, it1), jnp.float32),
        "wt2": _glorot(kt2, it1, it2), "bt2": jnp.zeros((1, it2), jnp.float32),
        # scalar bias parameter self.b, initialized to 0.0 (as in the module)
        "b": jnp.zeros((1,), jnp.float32),
    }


def deeponet_reference(x_func, x_loc, p):
    hp = jax.lax.Precision.HIGHEST
    h = jnp.tanh(jnp.dot(x_func, p["wb1"], precision=hp) + p["bb1"])
    branch = jnp.dot(h, p["wb2"], precision=hp) + p["bb2"]
    h2 = jnp.tanh(jnp.dot(x_loc, p["wt1"], precision=hp) + p["bt1"])
    trunk = jnp.tanh(jnp.dot(h2, p["wt2"], precision=hp) + p["bt2"])
    return jnp.sum(branch * trunk, axis=-1, keepdims=True) + p["b"][0]


if __name__ == "__main__":
    # Widths consistent with the module: branch [16, 32, 32], trunk [2, 32, 32].
    layer_sizes_branch = [16, 32, 32]
    layer_sizes_trunk = [2, 32, 32]

    key = jax.random.PRNGKey(0)
    kparam, kf, kl, kf2, kl2 = jax.random.split(key, 5)
    params = make_params(kparam, layer_sizes_branch, layer_sizes_trunk)

    # Small case (single grid step, padded batch).
    batch = 8
    x_func = jax.random.normal(kf, (batch, layer_sizes_branch[0]), dtype=jnp.float32)
    x_loc = jax.random.normal(kl, (batch, layer_sizes_trunk[0]), dtype=jnp.float32)
    out = jax.block_until_ready(deeponet_forward_jit(x_func, x_loc, params))
    ref = deeponet_reference(x_func, x_loc, params)
    assert out.shape == (batch, 1)
    assert jnp.allclose(out, ref, atol=1e-4, rtol=1e-4)

    # Larger, non-multiple batch: exercises multi-step grid, padding, weight residency.
    batch2 = 1000
    x_func2 = jax.random.normal(kf2, (batch2, layer_sizes_branch[0]), dtype=jnp.float32)
    x_loc2 = jax.random.normal(kl2, (batch2, layer_sizes_trunk[0]), dtype=jnp.float32)
    out2 = jax.block_until_ready(deeponet_forward_jit(x_func2, x_loc2, params))
    ref2 = deeponet_reference(x_func2, x_loc2, params)
    assert out2.shape == (batch2, 1)
    assert jnp.allclose(out2, ref2, atol=1e-4, rtol=1e-4)

    print("KERNEL_OK")
</pallas_src>

<mosaic_0001>
module attributes {stable_mosaic.version = 11 : i64} {
  func.func @deeponet_kernel(%arg0: i32, %arg1: memref<1xf32, #tpu.memory_space<smem>>, %arg2: memref<128x18xf32, #tpu.memory_space<vmem>>, %arg3: memref<18x64xf32, #tpu.memory_space<vmem>>, %arg4: memref<1x64xf32, #tpu.memory_space<vmem>>, %arg5: memref<64x64xf32, #tpu.memory_space<vmem>>, %arg6: memref<1x64xf32, #tpu.memory_space<vmem>>, %arg7: memref<1x1x128xf32, #tpu.memory_space<vmem>>) attributes {dimension_semantics = [#tpu.dimension_semantics<parallel>], iteration_bounds = array<i64: 1>, scalar_prefetch = 0 : i64, scratch_operands = 0 : i64, tpu.core_type = #tpu.core_type<tc>, window_params = [{transform_indices = @transform_0, window_bounds = array<i64: 1>}, {transform_indices = @transform_1, window_bounds = array<i64: 128, 18>}, {pipeline_mode = #tpu.pipeline_mode<synchronous>, transform_indices = @transform_2, window_bounds = array<i64: 18, 64>}, {pipeline_mode = #tpu.pipeline_mode<synchronous>, transform_indices = @transform_3, window_bounds = array<i64: 1, 64>}, {pipeline_mode = #tpu.pipeline_mode<synchronous>, transform_indices = @transform_4, window_bounds = array<i64: 64, 64>}, {pipeline_mode = #tpu.pipeline_mode<synchronous>, transform_indices = @transform_5, window_bounds = array<i64: 1, 64>}, {transform_indices = @transform_6, window_bounds = array<i64: 1, 1, 128>}]} {
    %c0 = arith.constant 0 : index
    %c0_0 = arith.constant 0 : index
    %0 = vector.load %arg2[%c0, %c0_0] : memref<128x18xf32, #tpu.memory_space<vmem>>, vector<128x18xf32>
    %c0_1 = arith.constant 0 : index
    %c0_2 = arith.constant 0 : index
    %1 = vector.load %arg3[%c0_1, %c0_2] : memref<18x64xf32, #tpu.memory_space<vmem>>, vector<18x64xf32>
    %cst = arith.constant dense<0.000000e+00> : vector<128x64xf32>
    %2 = tpu.matmul %0, %1, %cst {dimension_numbers = #tpu.dot_dimension_numbers<[1], [0], [0], [1], [0, 0, 1, 1], [], []>} : vector<128x18xf32>, vector<18x64xf32>, vector<128x64xf32> -> vector<128x64xf32>
    %c0_3 = arith.constant 0 : index
    %c0_4 = arith.constant 0 : index
    %3 = vector.load %arg4[%c0_3, %c0_4] : memref<1x64xf32, #tpu.memory_space<vmem>>, vector<1x64xf32>
    %4 = vector.broadcast %3 : vector<1x64xf32> to vector<128x64xf32>
    %5 = arith.addf %2, %4 : vector<128x64xf32>
    %6 = math.tanh %5 : vector<128x64xf32>
    %c0_5 = arith.constant 0 : index
    %c0_6 = arith.constant 0 : index
    %7 = vector.load %arg5[%c0_5, %c0_6] : memref<64x64xf32, #tpu.memory_space<vmem>>, vector<64x64xf32>
    %cst_7 = arith.constant dense<0.000000e+00> : vector<128x64xf32>
    %8 = tpu.matmul %6, %7, %cst_7 {dimension_numbers = #tpu.dot_dimension_numbers<[1], [0], [0], [1], [0, 0, 1, 1], [], []>} : vector<128x64xf32>, vector<64x64xf32>, vector<128x64xf32> -> vector<128x64xf32>
    %c0_8 = arith.constant 0 : index
    %c0_9 = arith.constant 0 : index
    %9 = vector.load %arg6[%c0_8, %c0_9] : memref<1x64xf32, #tpu.memory_space<vmem>>, vector<1x64xf32>
    %10 = vector.broadcast %9 : vector<1x64xf32> to vector<128x64xf32>
    %11 = arith.addf %8, %10 : vector<128x64xf32>
    %12 = vector.extract_strided_slice %11 {offsets = [0, 0], sizes = [128, 32], strides = [1, 1]} : vector<128x64xf32> to vector<128x32xf32>
    %13 = vector.extract_strided_slice %11 {offsets = [0, 32], sizes = [128, 32], strides = [1, 1]} : vector<128x64xf32> to vector<128x32xf32>
    %14 = math.tanh %13 : vector<128x32xf32>
    %15 = arith.mulf %12, %14 : vector<128x32xf32>
    %cst_10 = arith.constant dense<0.000000e+00> : vector<128xf32>
    %16 = vector.multi_reduction <add>, %15, %cst_10 [1] : vector<128x32xf32> to vector<128xf32>
    %c0_11 = arith.constant 0 : index
    %17 = memref.load %arg1[%c0_11] : memref<1xf32, #tpu.memory_space<smem>>
    %18 = vector.broadcast %17 : f32 to vector<128xf32>
    %19 = arith.addf %16, %18 : vector<128xf32>
    %20 = vector.shape_cast %19 : vector<128xf32> to vector<1x1x128xf32>
    %c0_12 = arith.constant 0 : index
    %c0_13 = arith.constant 0 : index
    %c0_14 = arith.constant 0 : index
    %21 = vector.load %arg7[%c0_12, %c0_13, %c0_14] : memref<1x1x128xf32, #tpu.memory_space<vmem>>, vector<1x1x128xf32>
    tpu.vector_store %arg7[%c0_12, %c0_13, %c0_14], %20 {strides = array<i32>} : memref<1x1x128xf32, #tpu.memory_space<vmem>>, vector<1x1x128xf32>,
    return
  }
  func.func @transform_0(%arg0: i32) -> i32 {
    %c0_i32 = arith.constant 0 : i32
    %c0_i32_0 = arith.constant 0 : i32
    return %c0_i32 : i32
  }
  func.func @transform_1(%arg0: i32) -> (i32, i32) {
    %c0_i32 = arith.constant 0 : i32
    %c0_i32_0 = arith.constant 0 : i32
    return %arg0, %c0_i32 : i32, i32
  }
  func.func @transform_2(%arg0: i32) -> (i32, i32) {
    %c0_i32 = arith.constant 0 : i32
    %c0_i32_0 = arith.constant 0 : i32
    %c0_i32_1 = arith.constant 0 : i32
    return %c0_i32, %c0_i32_0 : i32, i32
  }
  func.func @transform_3(%arg0: i32) -> (i32, i32) {
    %c0_i32 = arith.constant 0 : i32
    %c0_i32_0 = arith.constant 0 : i32
    %c0_i32_1 = arith.constant 0 : i32
    return %c0_i32, %c0_i32_0 : i32, i32
  }
  func.func @transform_4(%arg0: i32) -> (i32, i32) {
    %c0_i32 = arith.constant 0 : i32
    %c0_i32_0 = arith.constant 0 : i32
    %c0_i32_1 = arith.constant 0 : i32
    return %c0_i32, %c0_i32_0 : i32, i32
  }
  func.func @transform_5(%arg0: i32) -> (i32, i32) {
    %c0_i32 = arith.constant 0 : i32
    %c0_i32_0 = arith.constant 0 : i32
    %c0_i32_1 = arith.constant 0 : i32
    return %c0_i32, %c0_i32_0 : i32, i32
  }
  func.func @transform_6(%arg0: i32) -> (i32, i32, i32) {
    %c0_i32 = arith.constant 0 : i32
    %c0_i32_0 = arith.constant 0 : i32
    %c0_i32_1 = arith.constant 0 : i32
    return %arg0, %c0_i32, %c0_i32_0 : i32, i32, i32
  }
}

</mosaic_0001>

<llo_original>
// kernel: deeponet_forward.1
$region0: #{deeponet_forward.1}
  #allocation0 [shape = 'u32[]', space=smem, size = 0x4, offset = 0x4, fixed_abs, tag = 'smem constant byte address 0x4 - core index']
  #allocation1 [shape = 'u32[144,128]{1,0:T(1,128)}', space=vmem, size = 0x12000, scoped, tag = 'internal scratch']
  #allocation2 [shape = 'f32[1]{0:T(128)S(6)}', space=smem, size = 0x200, scoped, tag = 'scoped memory for deeponet_forward.1']
  %s0 = inlined_call_operand.<no memory space> [shape: f32[1], index: 0, kind: input, shape index: {}]
  %s1 = inlined_call_operand.vmem [shape: f32[128,18], index: 1, kind: input, shape index: {}]
  %s2 = inlined_call_operand.vmem [shape: f32[18,64], index: 2, kind: input, shape index: {}]
  %s3 = inlined_call_operand.vmem [shape: f32[1,64], index: 3, kind: input, shape index: {}]
  %s4 = inlined_call_operand.vmem [shape: f32[64,64], index: 4, kind: input, shape index: {}]
  %s5 = inlined_call_operand.vmem [shape: f32[1,64], index: 5, kind: input, shape index: {}]
  %s6 = inlined_call_operand.vmem [shape: f32[1,1,128], index: 6, kind: output, shape index: {}]
  %s7 = sld [smem:[#allocation0]]
  $region34: #{deeponet_forward.1} parent=0
    _
  %s9 = ssub.s32 1, %s7
  %s10 = scalar_select 0, %s9, %s7
  %11 = sst [smem:[#allocation2]] %s0
  // Predicated region
  $region2: #{deeponet_forward.1} parent=0 // pred_check
    _
  $region3: #{deeponet_forward.1} parent=0 // pred_check_branch
    %13 = sbr.rel (0) target = $region5
  $region4: #{deeponet_forward.1} parent=0 // pred_region
    _
  $region5: #{deeponet_forward.1} parent=0 // pred_fallthru
    _
  // Predicated region
  $region6: #{deeponet_forward.1} parent=0 // pred_check
    _
  $region7: #{deeponet_forward.1} parent=0 // pred_check_branch
    %15 = sbr.rel (0) target = $region9
  $region8: #{deeponet_forward.1} parent=0 // pred_region
    _
  $region9: #{deeponet_forward.1} parent=0 // pred_fallthru
    _
  // Predicated region
  $region10: #{deeponet_forward.1} parent=0 // pred_check
    _
  $region11: #{deeponet_forward.1} parent=0 // pred_check_branch
    %17 = sbr.rel (0) target = $region13
  $region12: #{deeponet_forward.1} parent=0 // pred_region
    _
  $region13: #{deeponet_forward.1} parent=0 // pred_fallthru
    _
  // Predicated region
  $region14: #{deeponet_forward.1} parent=0 // pred_check
    _
  $region15: #{deeponet_forward.1} parent=0 // pred_check_branch
    %19 = sbr.rel (0) target = $region17
  $region16: #{deeponet_forward.1} parent=0 // pred_region
    _
  $region17: #{deeponet_forward.1} parent=0 // pred_fallthru
    _
  // Predicated region
  $region18: #{deeponet_forward.1} parent=0 // pred_check
    _
  $region19: #{deeponet_forward.1} parent=0 // pred_check_branch
    %21 = sbr.rel (0) target = $region21
  $region20: #{deeponet_forward.1} parent=0 // pred_region
    _
  $region21: #{deeponet_forward.1} parent=0 // pred_fallthru
    _
  // Predicated region
  $region22: #{deeponet_forward.1} parent=0 // pred_check
    _
  $region23: #{deeponet_forward.1} parent=0 // pred_check_branch
    %23 = sbr.rel (0) target = $region25
  $region24: #{deeponet_forward.1} parent=0 // pred_region
    _
  $region25: #{deeponet_forward.1} parent=0 // pred_fallthru
    _
  %v24 = vld [vmem:[%s1] sm:$0xff]
  %v25 = vld [vmem:[%s1 + $0x8] sm:$0xff]
  %v26 = vld [vmem:[%s1 + $0x10] sm:$0xff]
  %v27 = vld [vmem:[%s1 + $0x18] sm:$0xff]
  %v28 = vld [vmem:[%s1 + $0x20] sm:$0xff]
  %v29 = vld [vmem:[%s1 + $0x28] sm:$0xff]
  %v30 = vld [vmem:[%s1 + $0x30] sm:$0xff]
  %v31 = vld [vmem:[%s1 + $0x38] sm:$0xff]
  %v32 = vld [vmem:[%s1 + $0x40] sm:$0xff]
  %v33 = vld [vmem:[%s1 + $0x48] sm:$0xff]
  %v34 = vld [vmem:[%s1 + $0x50] sm:$0xff]
  %v35 = vld [vmem:[%s1 + $0x58] sm:$0xff]
  %v36 = vld [vmem:[%s1 + $0x60] sm:$0xff]
  %v37 = vld [vmem:[%s1 + $0x68] sm:$0xff]
  %v38 = vld [vmem:[%s1 + $0x70] sm:$0xff]
  %v39 = vld [vmem:[%s1 + $0x78] sm:$0xff]
  %v40 = vld [vmem:[%s2] sm:$0xff]
  %v41 = vld [vmem:[%s2 + $0x8] sm:$0xff]
  %v42 = vld [vmem:[%s2 + $0x10] sm:$0x3]
  %v43 = vld [vmem:[%s3] sm:$0x1]
  %v45 = vlaneseq
  %v46 = vshrl.u32 %v45, 7
  %v47 = vsub.s32 0, %v46
  %v48 = vrot.slane %v43, %v47
  %vm50 = vcmask 146432
  %v52 = vsel %vm50, %v24, 0
  %v55 = vsel %vm50, %v25, 0
  %v58 = vsel %vm50, %v26, 0
  %v61 = vsel %vm50, %v27, 0
  %v64 = vsel %vm50, %v28, 0
  %v67 = vsel %vm50, %v29, 0
  %v70 = vsel %vm50, %v30, 0
  %v73 = vsel %vm50, %v31, 0
  %v76 = vsel %vm50, %v32, 0
  %v79 = vsel %vm50, %v33, 0
  %v82 = vsel %vm50, %v34, 0
  %v85 = vsel %vm50, %v35, 0
  %v88 = vsel %vm50, %v36, 0
  %v91 = vsel %vm50, %v37, 0
  %v94 = vsel %vm50, %v38, 0
  %v97 = vsel %vm50, %v39, 0
  %vm99 = vcmask 1041408
  %v101 = vsel %vm99, %v42, 0
  %103 = vmatprep.subr.mxu0 0.0
  %104 = vmatpush1.msra.mxu0 0.0
  %105 = vmatprep.subr.mxu0 0.0
  %106 = vmatpush1.msra.mxu0 0.0
  %107 = vmatprep.subr.mxu0 0.0
  %108 = vmatpush1.msra.mxu0 0.0
  %109 = vmatprep.subr.mxu0 0.0
  %110 = vmatpush1.msra.mxu0 0.0
  %111 = vmatprep.subr.mxu0 0.0
  %112 = vmatpush1.msra.mxu0 0.0
  %113 = vmatprep.subr.mxu0 0.0
  %114 = vmatpush1.msra.mxu0 0.0
  %115 = vmatprep.subr.mxu0 0.0
  %116 = vmatpush1.msra.mxu0 0.0
  %117 = vmatprep.subr.mxu0 0.0
  %118 = vmatpush1.msra.mxu0 0.0
  %119 = vmatprep.subr.mxu0 0.0
  %120 = vmatpush1.msra.mxu0 0.0
  %121 = vmatprep.subr.mxu0 0.0
  %122 = vmatpush1.msra.mxu0 0.0
  %123 = vmatprep.subr.mxu0 0.0
  %124 = vmatpush1.msra.mxu0 0.0
  %125 = vmatprep.subr.mxu0 0.0
  %126 = vmatpush1.msra.mxu0 0.0
  %127 = vmatprep.subr.mxu0 0.0
  %128 = vmatpush1.msra.mxu0 0.0
  %129 = vmatprep.subr.mxu0 0.0
  %130 = vmatpush1.msra.mxu0 %v101
  %131 = vmatprep.subr.mxu0 0.0
  %132 = vmatpush1.msra.mxu0 %v41
  %133 = vmatprep.subr.mxu0 0.0
  %134 = vmatpush1.msra.mxu0 %v40
  %135 = vmatprep.subr.mxu0 0.0
  %136 = vmatpush2.msra.mxu0 0.0
  %137 = vmatprep.subr.mxu0 0.0
  %138 = vmatpush2.msra.mxu0 0.0
  %139 = vmatprep.subr.mxu0 0.0
  %140 = vmatpush2.msra.mxu0 0.0
  %141 = vmatprep.subr.mxu0 0.0
  %142 = vmatpush2.msra.mxu0 0.0
  %143 = vmatprep.subr.mxu0 0.0
  %144 = vmatpush2.msra.mxu0 0.0
  %145 = vmatprep.subr.mxu0 0.0
  %146 = vmatpush2.msra.mxu0 0.0
  %147 = vmatprep.subr.mxu0 0.0
  %148 = vmatpush2.msra.mxu0 0.0
  %149 = vmatprep.subr.mxu0 0.0
  %150 = vmatpush2.msra.mxu0 0.0
  %151 = vmatprep.subr.mxu0 0.0
  %152 = vmatpush2.msra.mxu0 0.0
  %153 = vmatprep.subr.mxu0 0.0
  %154 = vmatpush2.msra.mxu0 0.0
  %155 = vmatprep.subr.mxu0 0.0
  %156 = vmatpush2.msra.mxu0 0.0
  %157 = vmatprep.subr.mxu0 0.0
  %158 = vmatpush2.msra.mxu0 0.0
  %159 = vmatprep.subr.mxu0 0.0
  %160 = vmatpush2.msra.mxu0 0.0
  %161 = vmatprep.subr.mxu0 0.0
  %162 = vmatpush2.msra.mxu0 0.0
  %163 = vmatprep.subr.mxu0 0.0
  %164 = vmatpush2.msra.mxu0 0.0
  %165 = vmatprep.subr.mxu0 0.0
  %166 = vmatpush2.msra.mxu0 0.0
  %167 = vmatprep.mubr.f32.mxu0 0.0
  %168 = vmatmul.mubr.f32.gmra.mxu0 %v52
  %v169 = vpop.f32.mrf.mxu0
  %v170 = vadd.f32 %v48, %v169
  %v171 = vpop.f32.mrf.mxu0
  %172 = vmatprep.mubr.f32.mxu0 0.0
  %173 = vmatmul.mubr.f32.gmra.mxu0 %v55
  %v174 = vpop.f32.mrf.mxu0
  %v175 = vadd.f32 %v48, %v174
  %v176 = vpop.f32.mrf.mxu0
  %177 = vmatprep.mubr.f32.mxu0 0.0
  %178 = vmatmul.mubr.f32.gmra.mxu0 %v58
  %v179 = vpop.f32.mrf.mxu0
  %v180 = vadd.f32 %v48, %v179
  %v181 = vpop.f32.mrf.mxu0
  %182 = vmatprep.mubr.f32.mxu0 0.0
  %183 = vmatmul.mubr.f32.gmra.mxu0 %v61
  %v184 = vpop.f32.mrf.mxu0
  %v185 = vadd.f32 %v48, %v184
  %v186 = vpop.f32.mrf.mxu0
  %187 = vmatprep.mubr.f32.mxu0 0.0
  %188 = vmatmul.mubr.f32.gmra.mxu0 %v64
  %v189 = vpop.f32.mrf.mxu0
  %v190 = vadd.f32 %v48, %v189
  %v191 = vpop.f32.mrf.mxu0
  %192 = vmatprep.mubr.f32.mxu0 0.0
  %193 = vmatmul.mubr.f32.gmra.mxu0 %v67
  %v194 = vpop.f32.mrf.mxu0
  %v195 = vadd.f32 %v48, %v194
  %v196 = vpop.f32.mrf.mxu0
  %197 = vmatprep.mubr.f32.mxu0 0.0
  %198 = vmatmul.mubr.f32.gmra.mxu0 %v70
  %v199 = vpop.f32.mrf.mxu0
  %v200 = vadd.f32 %v48, %v199
  %v201 = vpop.f32.mrf.mxu0
  %202 = vmatprep.mubr.f32.mxu0 0.0
  %203 = vmatmul.mubr.f32.gmra.mxu0 %v73
  %v204 = vpop.f32.mrf.mxu0
  %v205 = vadd.f32 %v48, %v204
  %v206 = vpop.f32.mrf.mxu0
  %207 = vmatprep.mubr.f32.mxu0 0.0
  %208 = vmatmul.mubr.f32.gmra.mxu0 %v76
  %v209 = vpop.f32.mrf.mxu0
  %v210 = vadd.f32 %v48, %v209
  %v211 = vpop.f32.mrf.mxu0
  %212 = vmatprep.mubr.f32.mxu0 0.0
  %213 = vmatmul.mubr.f32.gmra.mxu0 %v79
  %v214 = vpop.f32.mrf.mxu0
  %v215 = vadd.f32 %v48, %v214
  %v216 = vpop.f32.mrf.mxu0
  %217 = vmatprep.mubr.f32.mxu0 0.0
  %218 = vmatmul.mubr.f32.gmra.mxu0 %v82
  %v219 = vpop.f32.mrf.mxu0
  %v220 = vadd.f32 %v48, %v219
  %v221 = vpop.f32.mrf.mxu0
  %222 = vmatprep.mubr.f32.mxu0 0.0
  %223 = vmatmul.mubr.f32.gmra.mxu0 %v85
  %v224 = vpop.f32.mrf.mxu0
  %v225 = vadd.f32 %v48, %v224
  %v226 = vpop.f32.mrf.mxu0
  %227 = vmatprep.mubr.f32.mxu0 0.0
  %228 = vmatmul.mubr.f32.gmra.mxu0 %v88
  %v229 = vpop.f32.mrf.mxu0
  %v230 = vadd.f32 %v48, %v229
  %v231 = vpop.f32.mrf.mxu0
  %232 = vmatprep.mubr.f32.mxu0 0.0
  %233 = vmatmul.mubr.f32.gmra.mxu0 %v91
  %v234 = vpop.f32.mrf.mxu0
  %v235 = vadd.f32 %v48, %v234
  %v236 = vpop.f32.mrf.mxu0
  %237 = vmatprep.mubr.f32.mxu0 0.0
  %238 = vmatmul.mubr.f32.gmra.mxu0 %v94
  %v239 = vpop.f32.mrf.mxu0
  %v240 = vadd.f32 %v48, %v239
  %v241 = vpop.f32.mrf.mxu0
  %242 = vmatprep.mubr.f32.mxu0 0.0
  %243 = vmatmul.mubr.f32.gmra.mxu0 %v97
  %v244 = vpop.f32.mrf.mxu0
  %v245 = vadd.f32 %v48, %v244
  %v246 = vpop.f32.mrf.mxu0
  %247 = vdwg.mxu0
  %v248 = vtanh.pop %v170
  %v249 = vtanh.pop %v175
  %v250 = vtanh.pop %v180
  %v251 = vtanh.pop %v185
  %v252 = vtanh.pop %v190
  %v253 = vtanh.pop %v195
  %v254 = vtanh.pop %v200
  %v255 = vtanh.pop %v205
  %v256 = vtanh.pop %v210
  %v257 = vtanh.pop %v215
  %v258 = vtanh.pop %v220
  %v259 = vtanh.pop %v225
  %v260 = vtanh.pop %v230
  %v261 = vtanh.pop %v235
  %v262 = vtanh.pop %v240
  %v263 = vtanh.pop %v245
  %v264 = vld [vmem:[%s4] sm:$0xff]
  %v265 = vld [vmem:[%s4 + $0x8] sm:$0xff]
  %v266 = vld [vmem:[%s4 + $0x10] sm:$0xff]
  %v267 = vld [vmem:[%s4 + $0x18] sm:$0xff]
  %v268 = vld [vmem:[%s4 + $0x20] sm:$0xff]
  %v269 = vld [vmem:[%s4 + $0x28] sm:$0xff]
  %v270 = vld [vmem:[%s4 + $0x30] sm:$0xff]
  %v271 = vld [vmem:[%s4 + $0x38] sm:$0xff]
  %v272 = vld [vmem:[%s5] sm:$0x1]
  %v274 = vlaneseq
  %v275 = vshrl.u32 %v274, 7
  %v276 = vsub.s32 0, %v275
  %v277 = vrot.slane %v272, %v276
  %vm279 = vcmask 523264
  %v281 = vsel %vm279, %v248, 0
  %v284 = vsel %vm279, %v249, 0
  %v287 = vsel %vm279, %v250, 0
  %v290 = vsel %vm279, %v251, 0
  %v293 = vsel %vm279, %v252, 0
  %v296 = vsel %vm279, %v253, 0
  %v299 = vsel %vm279, %v254, 0
  %v302 = vsel %vm279, %v255, 0
  %v305 = vsel %vm279, %v256, 0
  %v308 = vsel %vm279, %v257, 0
  %v311 = vsel %vm279, %v258, 0
  %v314 = vsel %vm279, %v259, 0
  %v317 = vsel %vm279, %v260, 0
  %v320 = vsel %vm279, %v261, 0
  %v323 = vsel %vm279, %v262, 0
  %v326 = vsel %vm279, %v263, 0
  %328 = vmatprep.subr.mxu0 0.0
  %329 = vmatpush1.msra.mxu0 0.0
  %330 = vmatprep.subr.mxu0 0.0
  %331 = vmatpush1.msra.mxu0 0.0
  %332 = vmatprep.subr.mxu0 0.0
  %333 = vmatpush1.msra.mxu0 0.0
  %334 = vmatprep.subr.mxu0 0.0
  %335 = vmatpush1.msra.mxu0 0.0
  %336 = vmatprep.subr.mxu0 0.0
  %337 = vmatpush1.msra.mxu0 0.0
  %338 = vmatprep.subr.mxu0 0.0
  %339 = vmatpush1.msra.mxu0 0.0
  %340 = vmatprep.subr.mxu0 0.0
  %341 = vmatpush1.msra.mxu0 0.0
  %342 = vmatprep.subr.mxu0 0.0
  %343 = vmatpush1.msra.mxu0 0.0
  %344 = vmatprep.subr.mxu0 0.0
  %345 = vmatpush1.msra.mxu0 %v271
  %346 = vmatprep.subr.mxu0 0.0
  %347 = vmatpush1.msra.mxu0 %v270
  %348 = vmatprep.subr.mxu0 0.0
  %349 = vmatpush1.msra.mxu0 %v269
  %350 = vmatprep.subr.mxu0 0.0
  %351 = vmatpush1.msra.mxu0 %v268
  %352 = vmatprep.subr.mxu0 0.0
  %353 = vmatpush1.msra.mxu0 %v267
  %354 = vmatprep.subr.mxu0 0.0
  %355 = vmatpush1.msra.mxu0 %v266
  %356 = vmatprep.subr.mxu0 0.0
  %357 = vmatpush1.msra.mxu0 %v265
  %358 = vmatprep.subr.mxu0 0.0
  %359 = vmatpush1.msra.mxu0 %v264
  %360 = vmatprep.subr.mxu0 0.0
  %361 = vmatpush2.msra.mxu0 0.0
  %362 = vmatprep.subr.mxu0 0.0
  %363 = vmatpush2.msra.mxu0 0.0
  %364 = vmatprep.subr.mxu0 0.0
  %365 = vmatpush2.msra.mxu0 0.0
  %366 = vmatprep.subr.mxu0 0.0
  %367 = vmatpush2.msra.mxu0 0.0
  %368 = vmatprep.subr.mxu0 0.0
  %369 = vmatpush2.msra.mxu0 0.0
  %370 = vmatprep.subr.mxu0 0.0
  %371 = vmatpush2.msra.mxu0 0.0
  %372 = vmatprep.subr.mxu0 0.0
  %373 = vmatpush2.msra.mxu0 0.0
  %374 = vmatprep.subr.mxu0 0.0
  %375 = vmatpush2.msra.mxu0 0.0
  %376 = vmatprep.subr.mxu0 0.0
  %377 = vmatpush2.msra.mxu0 0.0
  %378 = vmatprep.subr.mxu0 0.0
  %379 = vmatpush2.msra.mxu0 0.0
  %380 = vmatprep.subr.mxu0 0.0
  %381 = vmatpush2.msra.mxu0 0.0
  %382 = vmatprep.subr.mxu0 0.0
  %383 = vmatpush2.msra.mxu0 0.0
  %384 = vmatprep.subr.mxu0 0.0
  %385 = vmatpush2.msra.mxu0 0.0
  %386 = vmatprep.subr.mxu0 0.0
  %387 = vmatpush2.msra.mxu0 0.0
  %388 = vmatprep.subr.mxu0 0.0
  %389 = vmatpush2.msra.mxu0 0.0
  %390 = vmatprep.subr.mxu0 0.0
  %391 = vmatpush2.msra.mxu0 0.0
  %392 = vmatprep.mubr.f32.mxu0 0.0
  %393 = vmatmul.mubr.f32.gmra.mxu0 %v281
  %v394 = vpop.f32.mrf.mxu0
  %v395 = vadd.f32 %v277, %v394
  %v396 = vpop.f32.mrf.mxu0
  %397 = vmatprep.mubr.f32.mxu0 0.0
  %398 = vmatmul.mubr.f32.gmra.mxu0 %v284
  %v399 = vpop.f32.mrf.mxu0
  %v400 = vadd.f32 %v277, %v399
  %v401 = vpop.f32.mrf.mxu0
  %402 = vmatprep.mubr.f32.mxu0 0.0
  %403 = vmatmul.mubr.f32.gmra.mxu0 %v287
  %v404 = vpop.f32.mrf.mxu0
  %v405 = vadd.f32 %v277, %v404
  %v406 = vpop.f32.mrf.mxu0
  %407 = vmatprep.mubr.f32.mxu0 0.0
  %408 = vmatmul.mubr.f32.gmra.mxu0 %v290
  %v409 = vpop.f32.mrf.mxu0
  %v410 = vadd.f32 %v277, %v409
  %v411 = vpop.f32.mrf.mxu0
  %412 = vmatprep.mubr.f32.mxu0 0.0
  %413 = vmatmul.mubr.f32.gmra.mxu0 %v293
  %v414 = vpop.f32.mrf.mxu0
  %v415 = vadd.f32 %v277, %v414
  %v416 = vpop.f32.mrf.mxu0
  %417 = vmatprep.mubr.f32.mxu0 0.0
  %418 = vmatmul.mubr.f32.gmra.mxu0 %v296
  %v419 = vpop.f32.mrf.mxu0
  %v420 = vadd.f32 %v277, %v419
  %v421 = vpop.f32.mrf.mxu0
  %422 = vmatprep.mubr.f32.mxu0 0.0
  %423 = vmatmul.mubr.f32.gmra.mxu0 %v299
  %v424 = vpop.f32.mrf.mxu0
  %v425 = vadd.f32 %v277, %v424
  %v426 = vpop.f32.mrf.mxu0
  %427 = vmatprep.mubr.f32.mxu0 0.0
  %428 = vmatmul.mubr.f32.gmra.mxu0 %v302
  %v429 = vpop.f32.mrf.mxu0
  %v430 = vadd.f32 %v277, %v429
  %v431 = vpop.f32.mrf.mxu0
  %432 = vmatprep.mubr.f32.mxu0 0.0
  %433 = vmatmul.mubr.f32.gmra.mxu0 %v305
  %v434 = vpop.f32.mrf.mxu0
  %v435 = vadd.f32 %v277, %v434
  %v436 = vpop.f32.mrf.mxu0
  %437 = vmatprep.mubr.f32.mxu0 0.0
  %438 = vmatmul.mubr.f32.gmra.mxu0 %v308
  %v439 = vpop.f32.mrf.mxu0
  %v440 = vadd.f32 %v277, %v439
  %v441 = vpop.f32.mrf.mxu0
  %442 = vmatprep.mubr.f32.mxu0 0.0
  %443 = vmatmul.mubr.f32.gmra.mxu0 %v311
  %v444 = vpop.f32.mrf.mxu0
  %v445 = vadd.f32 %v277, %v444
  %v446 = vpop.f32.mrf.mxu0
  %447 = vmatprep.mubr.f32.mxu0 0.0
  %448 = vmatmul.mubr.f32.gmra.mxu0 %v314
  %v449 = vpop.f32.mrf.mxu0
  %v450 = vadd.f32 %v277, %v449
  %v451 = vpop.f32.mrf.mxu0
  %452 = vmatprep.mubr.f32.mxu0 0.0
  %453 = vmatmul.mubr.f32.gmra.mxu0 %v317
  %v454 = vpop.f32.mrf.mxu0
  %v455 = vadd.f32 %v277, %v454
  %v456 = vpop.f32.mrf.mxu0
  %457 = vmatprep.mubr.f32.mxu0 0.0
  %458 = vmatmul.mubr.f32.gmra.mxu0 %v320
  %v459 = vpop.f32.mrf.mxu0
  %v460 = vadd.f32 %v277, %v459
  %v461 = vpop.f32.mrf.mxu0
  %462 = vmatprep.mubr.f32.mxu0 0.0
  %463 = vmatmul.mubr.f32.gmra.mxu0 %v323
  %v464 = vpop.f32.mrf.mxu0
  %v465 = vadd.f32 %v277, %v464
  %v466 = vpop.f32.mrf.mxu0
  %467 = vmatprep.mubr.f32.mxu0 0.0
  %468 = vmatmul.mubr.f32.gmra.mxu0 %v326
  %v469 = vpop.f32.mrf.mxu0
  %v470 = vadd.f32 %v277, %v469
  %v471 = vpop.f32.mrf.mxu0
  %472 = vdwg.mxu0
  %v473 = vtanh.pop %v395
  %v474 = vtanh.pop %v400
  %v475 = vtanh.pop %v405
  %v476 = vtanh.pop %v410
  %v477 = vtanh.pop %v415
  %v478 = vtanh.pop %v420
  %v479 = vtanh.pop %v425
  %v480 = vtanh.pop %v430
  %v481 = vtanh.pop %v435
  %v482 = vtanh.pop %v440
  %v483 = vtanh.pop %v445
  %v484 = vtanh.pop %v450
  %v485 = vtanh.pop %v455
  %v486 = vtanh.pop %v460
  %v487 = vtanh.pop %v465
  %v488 = vtanh.pop %v470
  %505 = vrot.lane.b32.xlu0 %v473, 96
  %v506 = vpop.permute.xlu0 %505
  %507 = vrot.lane.b32.xlu0 %v474, 96
  %v508 = vpop.permute.xlu0 %507
  %509 = vrot.lane.b32.xlu0 %v475, 96
  %v510 = vpop.permute.xlu0 %509
  %511 = vrot.lane.b32.xlu0 %v476, 96
  %v512 = vpop.permute.xlu0 %511
  %513 = vrot.lane.b32.xlu0 %v477, 96
  %v514 = vpop.permute.xlu0 %513
  %515 = vrot.lane.b32.xlu0 %v478, 96
  %v516 = vpop.permute.xlu0 %515
  %517 = vrot.lane.b32.xlu0 %v479, 96
  %v518 = vpop.permute.xlu0 %517
  %519 = vrot.lane.b32.xlu0 %v480, 96
  %v520 = vpop.permute.xlu0 %519
  %521 = vrot.lane.b32.xlu0 %v481, 96
  %v522 = vpop.permute.xlu0 %521
  %523 = vrot.lane.b32.xlu0 %v482, 96
  %v524 = vpop.permute.xlu0 %523
  %525 = vrot.lane.b32.xlu0 %v483, 96
  %v526 = vpop.permute.xlu0 %525
  %527 = vrot.lane.b32.xlu0 %v484, 96
  %v528 = vpop.permute.xlu0 %527
  %529 = vrot.lane.b32.xlu0 %v485, 96
  %v530 = vpop.permute.xlu0 %529
  %531 = vrot.lane.b32.xlu0 %v486, 96
  %v532 = vpop.permute.xlu0 %531
  %533 = vrot.lane.b32.xlu0 %v487, 96
  %v534 = vpop.permute.xlu0 %533
  %535 = vrot.lane.b32.xlu0 %v488, 96
  %v536 = vpop.permute.xlu0 %535
  %v553 = vmul.f32 %v395, %v506
  %v554 = vmul.f32 %v400, %v508
  %v555 = vmul.f32 %v405, %v510
  %v556 = vmul.f32 %v410, %v512
  %v557 = vmul.f32 %v415, %v514
  %v558 = vmul.f32 %v420, %v516
  %v559 = vmul.f32 %v425, %v518
  %v560 = vmul.f32 %v430, %v520
  %v561 = vmul.f32 %v435, %v522
  %v562 = vmul.f32 %v440, %v524
  %v563 = vmul.f32 %v445, %v526
  %v564 = vmul.f32 %v450, %v528
  %v565 = vmul.f32 %v455, %v530
  %v566 = vmul.f32 %v460, %v532
  %v567 = vmul.f32 %v465, %v534
  %v568 = vmul.f32 %v470, %v536
  %vm569 = vcmask 261120
  %v570 = vsel %vm569, %v553, 0.0
  %571 = vadd.xlane.f32.xlu0 %v570
  %v572 = vpop.xlane.xlu0 %571
  %v573 = vsel %vm569, %v554, 0.0
  %574 = vadd.xlane.f32.xlu0 %v573
  %v575 = vpop.xlane.xlu0 %574
  %v576 = vsel %vm569, %v555, 0.0
  %577 = vadd.xlane.f32.xlu0 %v576
  %v578 = vpop.xlane.xlu0 %577
  %v579 = vsel %vm569, %v556, 0.0
  %580 = vadd.xlane.f32.xlu0 %v579
  %v581 = vpop.xlane.xlu0 %580
  %v582 = vsel %vm569, %v557, 0.0
  %583 = vadd.xlane.f32.xlu0 %v582
  %v584 = vpop.xlane.xlu0 %583
  %v585 = vsel %vm569, %v558, 0.0
  %586 = vadd.xlane.f32.xlu0 %v585
  %v587 = vpop.xlane.xlu0 %586
  %v588 = vsel %vm569, %v559, 0.0
  %589 = vadd.xlane.f32.xlu0 %v588
  %v590 = vpop.xlane.xlu0 %589
  %v591 = vsel %vm569, %v560, 0.0
  %592 = vadd.xlane.f32.xlu0 %v591
  %v593 = vpop.xlane.xlu0 %592
  %v594 = vsel %vm569, %v561, 0.0
  %595 = vadd.xlane.f32.xlu0 %v594
  %v596 = vpop.xlane.xlu0 %595
  %v597 = vsel %vm569, %v562, 0.0
  %598 = vadd.xlane.f32.xlu0 %v597
  %v599 = vpop.xlane.xlu0 %598
  %v600 = vsel %vm569, %v563, 0.0
  %601 = vadd.xlane.f32.xlu0 %v600
  %v602 = vpop.xlane.xlu0 %601
  %v603 = vsel %vm569, %v564, 0.0
  %604 = vadd.xlane.f32.xlu0 %v603
  %v605 = vpop.xlane.xlu0 %604
  %v606 = vsel %vm569, %v565, 0.0
  %607 = vadd.xlane.f32.xlu0 %v606
  %v608 = vpop.xlane.xlu0 %607
  %v609 = vsel %vm569, %v566, 0.0
  %610 = vadd.xlane.f32.xlu0 %v609
  %v611 = vpop.xlane.xlu0 %610
  %v612 = vsel %vm569, %v567, 0.0
  %613 = vadd.xlane.f32.xlu0 %v612
  %v614 = vpop.xlane.xlu0 %613
  %v615 = vsel %vm569, %v568, 0.0
  %616 = vadd.xlane.f32.xlu0 %v615
  %v617 = vpop.xlane.xlu0 %616
  %s618 = sld [smem:[#allocation2]]
  %v619 = vstv %s618
  %v620 = vadd.f32 %v572, %v619
  %v621 = vadd.f32 %v575, %v619
  %v622 = vadd.f32 %v578, %v619
  %v623 = vadd.f32 %v581, %v619
  %v624 = vadd.f32 %v584, %v619
  %v625 = vadd.f32 %v587, %v619
  %v626 = vadd.f32 %v590, %v619
  %v627 = vadd.f32 %v593, %v619
  %v628 = vadd.f32 %v596, %v619
  %v629 = vadd.f32 %v599, %v619
  %v630 = vadd.f32 %v602, %v619
  %v631 = vadd.f32 %v605, %v619
  %v632 = vadd.f32 %v608, %v619
  %v633 = vadd.f32 %v611, %v619
  %v634 = vadd.f32 %v614, %v619
  %v635 = vadd.f32 %v617, %v619
  %v652 = vlaneseq
  %v653 = vand.u32 %v652, 127
  %v654 = vlaneseq
  %v655 = vshrl.u32 %v654, 7
  %v656 = vsub.s32 %v653, %v655
  %v657 = vrot.slane %v620, %v656
  %v658 = vadd.s32 %v653, 4294967288
  %v659 = vlaneseq
  %v660 = vshrl.u32 %v659, 7
  %v661 = vsub.s32 %v658, %v660
  %v662 = vrot.slane %v621, %v661
  %vm663 = vcmask 130112
  %v664 = vsel %vm663, %v662, %v657
  %v665 = vadd.s32 %v653, 4294967280
  %v666 = vlaneseq
  %v667 = vshrl.u32 %v666, 7
  %v668 = vsub.s32 %v665, %v667
  %v669 = vrot.slane %v622, %v668
  %vm670 = vcmask 195712
  %v671 = vsel %vm670, %v669, %v664
  %v672 = vadd.s32 %v653, 4294967272
  %v673 = vlaneseq
  %v674 = vshrl.u32 %v673, 7
  %v675 = vsub.s32 %v672, %v674
  %v676 = vrot.slane %v623, %v675
  %vm677 = vcmask 261312
  %v678 = vsel %vm677, %v676, %v671
  %v679 = vadd.s32 %v653, 4294967264
  %v680 = vlaneseq
  %v681 = vshrl.u32 %v680, 7
  %v682 = vsub.s32 %v679, %v681
  %v683 = vrot.slane %v624, %v682
  %vm684 = vcmask 326912
  %v685 = vsel %vm684, %v683, %v678
  %v686 = vadd.s32 %v653, 4294967256
  %v687 = vlaneseq
  %v688 = vshrl.u32 %v687, 7
  %v689 = vsub.s32 %v686, %v688
  %v690 = vrot.slane %v625, %v689
  %vm691 = vcmask 392512
  %v692 = vsel %vm691, %v690, %v685
  %v693 = vadd.s32 %v653, 4294967248
  %v694 = vlaneseq
  %v695 = vshrl.u32 %v694, 7
  %v696 = vsub.s32 %v693, %v695
  %v697 = vrot.slane %v626, %v696
  %vm698 = vcmask 458112
  %v699 = vsel %vm698, %v697, %v692
  %v700 = vadd.s32 %v653, 4294967240
  %v701 = vlaneseq
  %v702 = vshrl.u32 %v701, 7
  %v703 = vsub.s32 %v700, %v702
  %v704 = vrot.slane %v627, %v703
  %vm705 = vcmask 523712
  %v706 = vsel %vm705, %v704, %v699
  %v707 = vadd.s32 %v653, 4294967232
  %v708 = vlaneseq
  %v709 = vshrl.u32 %v708, 7
  %v710 = vsub.s32 %v707, %v709
  %v711 = vrot.slane %v628, %v710
  %vm712 = vcmask 589312
  %v713 = vsel %vm712, %v711, %v706
  %v714 = vadd.s32 %v653, 4294967224
  %v715 = vlaneseq
  %v716 = vshrl.u32 %v715, 7
  %v717 = vsub.s32 %v714, %v716
  %v718 = vrot.slane %v629, %v717
  %vm719 = vcmask 654912
  %v720 = vsel %vm719, %v718, %v713
  %v721 = vadd.s32 %v653, 4294967216
  %v722 = vlaneseq
  %v723 = vshrl.u32 %v722, 7
  %v724 = vsub.s32 %v721, %v723
  %v725 = vrot.slane %v630, %v724
  %vm726 = vcmask 720512
  %v727 = vsel %vm726, %v725, %v720
  %v728 = vadd.s32 %v653, 4294967208
  %v729 = vlaneseq
  %v730 = vshrl.u32 %v729, 7
  %v731 = vsub.s32 %v728, %v730
  %v732 = vrot.slane %v631, %v731
  %vm733 = vcmask 786112
  %v734 = vsel %vm733, %v732, %v727
  %v735 = vadd.s32 %v653, 4294967200
  %v736 = vlaneseq
  %v737 = vshrl.u32 %v736, 7
  %v738 = vsub.s32 %v735, %v737
  %v739 = vrot.slane %v632, %v738
  %vm740 = vcmask 851712
  %v741 = vsel %vm740, %v739, %v734
  %v742 = vadd.s32 %v653, 4294967192
  %v743 = vlaneseq
  %v744 = vshrl.u32 %v743, 7
  %v745 = vsub.s32 %v742, %v744
  %v746 = vrot.slane %v633, %v745
  %vm747 = vcmask 917312
  %v748 = vsel %vm747, %v746, %v741
  %v749 = vadd.s32 %v653, 4294967184
  %v750 = vlaneseq
  %v751 = vshrl.u32 %v750, 7
  %v752 = vsub.s32 %v749, %v751
  %v753 = vrot.slane %v634, %v752
  %vm754 = vcmask 982912
  %v755 = vsel %vm754, %v753, %v748
  %v756 = vadd.s32 %v653, 4294967176
  %v757 = vlaneseq
  %v758 = vshrl.u32 %v757, 7
  %v759 = vsub.s32 %v756, %v758
  %v760 = vrot.slane %v635, %v759
  %vm761 = vcmask 1048512
  %v762 = vsel %vm761, %v760, %v755
  %764 = vst [vmem:[%s6] sm:$0x1] %v762
  // Predicated region
  $region26: #{deeponet_forward.1} parent=0 // pred_check
    _
  $region27: #{deeponet_forward.1} parent=0 // pred_check_branch
    %766 = sbr.rel (0) target = $region29
  $region28: #{deeponet_forward.1} parent=0 // pred_region
    _
  $region29: #{deeponet_forward.1} parent=0 // pred_fallthru
    _
  // Predicated region
  $region30: #{deeponet_forward.1} parent=0 // pred_check
    _
  $region31: #{deeponet_forward.1} parent=0 // pred_check_branch
    %768 = sbr.rel (0) target = $region33
  $region32: #{deeponet_forward.1} parent=0 // pred_region
    _
  $region33: #{deeponet_forward.1} parent=0 // pred_fallthru
    _

</llo_original>
